<compile_context>
chip_gen: v5e
topology: v5e:2x2
jax: 0.10.0
libtpu: 0.0.40
codegen_flags: <defaults>
</compile_context>

<pallas_src>
import jax
import jax.numpy as jnp
from jax.experimental import pallas as pl
from jax.experimental.pallas import tpu as pltpu

EMBEDDING_SIZE = 64
_NEG_INF = -1e30


def _vmem_limit_bytes():
    # Size the scoped-VMEM budget from the actual chip instead of hardcoding.
    try:
        cap = pltpu.get_tpu_info().vmem_capacity_bytes
    except Exception:
        cap = 64 * 1024 * 1024
    return int(min(cap * 3 // 4, 100 * 1024 * 1024))


def _sage_conv1_kernel(adj_ref, xwl1_ref, x_ref, wr1_ref, b1_ref, h1_ref):
    # adj row-stripe arrives as int8 (half the HBM bytes of bf16); cast in VMEM.
    adj = adj_ref[...].astype(jnp.bfloat16)
    # Sum aggregation of the pre-projected neighbours: A[rows] @ (X @ Wl1).
    agg = jnp.dot(adj, xwl1_ref[...], preferred_element_type=jnp.float32)
    h = (agg
         + jnp.dot(x_ref[...], wr1_ref[...], preferred_element_type=jnp.float32)
         + b1_ref[...])
    h = jnp.maximum(h, 0.0)  # ReLU; eval-mode dropout is identity.
    # TODO(synk): training-mode F.dropout would need pltpu.prng_random_bits masking.
    h1_ref[...] = h.astype(h1_ref.dtype)


def _sage_conv2_kernel(adj_ref, h1_ref, wl2_ref, wr2_ref, b2_ref, out_ref):
    i = pl.program_id(0)
    tm = adj_ref.shape[0]
    row0 = pl.multiple_of(i * tm, tm)

    adj = adj_ref[...].astype(jnp.bfloat16)
    # Second sum aggregation over the full (VMEM-resident) bf16 h1, width = hidden.
    agg2 = jnp.dot(adj, h1_ref[...], preferred_element_type=jnp.float32)
    h_tile = h1_ref[pl.ds(row0, tm), :]
    logits = (jnp.dot(agg2.astype(jnp.bfloat16), wl2_ref[...],
                      preferred_element_type=jnp.float32)
              + jnp.dot(h_tile, wr2_ref[...], preferred_element_type=jnp.float32)
              + b2_ref[...])
    # Padded class columns carry a -1e30 bias -> exp() underflows to 0 and they
    # do not affect the log-sum-exp; wrapper slices [:, :n_classes].
    m = jnp.max(logits, axis=1, keepdims=True)
    lse = m + jnp.log(jnp.sum(jnp.exp(logits - m), axis=1, keepdims=True))
    out_ref[...] = logits - lse


def preprocess(adj, x, params, *, tm=128):
    """One-time graph/parameter preparation (do NOT call per forward pass).

    Pads N to a multiple of tm and classes to a lane-dense 128, quantizes adj to
    int8, casts features/weights to bf16 and hoists the layer-1 left projection
    XWl1 = X @ Wl1 so the in-kernel aggregation contracts over `hidden`.
    """
    n, f_in = x.shape
    hidden = params["wl1"].shape[1]
    n_classes = params["wl2"].shape[1]
    n_pad = pl.cdiv(n, tm) * tm
    c_pad = pl.cdiv(n_classes, 128) * 128

    adj_i8 = jnp.pad(adj, ((0, n_pad - n), (0, n_pad - n))).astype(jnp.int8)
    x_b = jnp.pad(x, ((0, n_pad - n), (0, 0))).astype(jnp.bfloat16)
    # Hoisted layer-1 projection (computed in f32, stored bf16). Padded rows are 0.
    xwl1 = jnp.pad(jnp.dot(x, params["wl1"]),
                   ((0, n_pad - n), (0, 0))).astype(jnp.bfloat16)
    wr1 = params["wr1"].astype(jnp.bfloat16)
    b1 = params["b1"].astype(jnp.float32)
    # Lane-dense (128-wide) class dimension; padded bias = -1e30 masks padded logits.
    wl2 = jnp.pad(params["wl2"], ((0, 0), (0, c_pad - n_classes))).astype(jnp.bfloat16)
    wr2 = jnp.pad(params["wr2"], ((0, 0), (0, c_pad - n_classes))).astype(jnp.bfloat16)
    b2 = jnp.concatenate(
        [params["b2"].astype(jnp.float32),
         jnp.full((1, c_pad - n_classes), _NEG_INF, jnp.float32)], axis=1)

    return {
        "adj": adj_i8, "x": x_b, "xwl1": xwl1, "wr1": wr1, "b1": b1,
        "wl2": wl2, "wr2": wr2, "b2": b2,
        "n": n, "n_classes": n_classes, "tm": tm,
    }


def net00_forward(prepped):
    adj, x, xwl1 = prepped["adj"], prepped["x"], prepped["xwl1"]
    wr1, b1 = prepped["wr1"], prepped["b1"]
    wl2, wr2, b2 = prepped["wl2"], prepped["wr2"], prepped["b2"]
    n, n_classes, tm = prepped["n"], prepped["n_classes"], prepped["tm"]

    n_pad = adj.shape[0]
    f_in = x.shape[1]
    hidden = xwl1.shape[1]
    c_pad = wl2.shape[1]
    n_tiles = n_pad // tm

    cparams = pltpu.CompilerParams(
        # Row stripes are fully independent in both kernels -> megacore-shardable.
        dimension_semantics=("parallel",),
        vmem_limit_bytes=_vmem_limit_bytes(),
    )
    stripe = lambda i: (i, 0)
    const = lambda i: (0, 0)

    # --- conv1 + ReLU: h1[rows] = relu(A[rows] @ XWl1 + X[rows] @ Wr1 + b1) ---
    # On v5e/v6e (128 MiB VMEM) tm=256 and pipeline_mode=pl.Buffered(3) on the
    # adj stripe are worth trying; kept at the safe default here.
    h1 = pl.pallas_call(
        _sage_conv1_kernel,
        out_shape=jax.ShapeDtypeStruct((n_pad, hidden), jnp.bfloat16),
        grid=(n_tiles,),
        in_specs=[
            pl.BlockSpec((tm, n_pad), stripe),      # adj row stripe (int8)
            pl.BlockSpec((n_pad, hidden), const),   # XWl1, VMEM-resident bf16
            pl.BlockSpec((tm, f_in), stripe),       # X row stripe (Wr1 term)
            pl.BlockSpec((f_in, hidden), const),    # Wr1 (bf16)
            pl.BlockSpec((1, hidden), const),       # b1 (f32)
        ],
        out_specs=pl.BlockSpec((tm, hidden), stripe),
        compiler_params=cparams,
    )(adj, xwl1, x, wr1, b1)

    # --- conv2 + log_softmax: out[rows] = lsm(A[rows] @ h1 @ Wl2 + h1[rows] @ Wr2 + b2)
    out = pl.pallas_call(
        _sage_conv2_kernel,
        out_shape=jax.ShapeDtypeStruct((n_pad, c_pad), jnp.float32),
        grid=(n_tiles,),
        in_specs=[
            pl.BlockSpec((tm, n_pad), stripe),      # adj row stripe (int8)
            pl.BlockSpec((n_pad, hidden), const),   # h1, VMEM-resident bf16
            pl.BlockSpec((hidden, c_pad), const),   # Wl2 (class-padded, bf16)
            pl.BlockSpec((hidden, c_pad), const),   # Wr2 (class-padded, bf16)
            pl.BlockSpec((1, c_pad), const),        # b2 (-1e30 in padded cols)
        ],
        out_specs=pl.BlockSpec((tm, c_pad), stripe),
        compiler_params=cparams,
    )(adj, h1, wl2, wr2, b2)

    return out[:n, :n_classes]


def init_params(key, f_in, f_hidden, n_classes):
    ks = jax.random.split(key, 6)
    scale1 = 1.0 / jnp.sqrt(f_in)
    scale2 = 1.0 / jnp.sqrt(f_hidden)
    return {
        # weights stored as [in, out] so the kernel computes x @ W directly
        "wl1": jax.random.normal(ks[0], (f_in, f_hidden), jnp.float32) * scale1,
        "wr1": jax.random.normal(ks[1], (f_in, f_hidden), jnp.float32) * scale1,
        "b1": jax.random.normal(ks[2], (1, f_hidden), jnp.float32) * 0.1,
        "wl2": jax.random.normal(ks[3], (f_hidden, n_classes), jnp.float32) * scale2,
        "wr2": jax.random.normal(ks[4], (f_hidden, n_classes), jnp.float32) * scale2,
        "b2": jax.random.normal(ks[5], (1, n_classes), jnp.float32) * 0.1,
    }


if __name__ == "__main__":
    key = jax.random.PRNGKey(0)
    k_x, k_adj, k_p = jax.random.split(key, 3)

    # Small synthetic graph standing in for the Reddit dataset.
    N = 256          # number of nodes (2 row tiles of 128)
    F_IN = 32        # node feature dim
    N_CLASSES = 16   # number of classes

    x = jax.random.normal(k_x, (N, F_IN), jnp.float32)
    # Random sparse-ish adjacency (adj_t equivalent), dense 0/1 representation.
    adj = (jax.random.uniform(k_adj, (N, N)) < 0.05).astype(jnp.float32)
    params = init_params(k_p, F_IN, EMBEDDING_SIZE, N_CLASSES)

    prepped = preprocess(adj, x, params, tm=128)   # once, outside the forward
    out = net00_forward(prepped)
    out = jax.block_until_ready(out)
    assert out.shape == (N, N_CLASSES)

    # 1) rows must be valid log-probabilities.
    assert jnp.allclose(jnp.sum(jnp.exp(out), axis=1), 1.0, atol=1e-3)

    # 2) precision-matched reference: identical bf16-rounded operands, f32
    #    accumulation.  Tight tolerance -> catches any plumbing/tiling bug.
    f32 = jnp.float32
    adj_b = prepped["adj"].astype(jnp.bfloat16)              # 0/1, exact in bf16
    h1_m = jnp.maximum(
        jnp.dot(adj_b, prepped["xwl1"], preferred_element_type=f32)
        + jnp.dot(prepped["x"], prepped["wr1"], preferred_element_type=f32)
        + prepped["b1"], 0.0).astype(jnp.bfloat16)
    agg2_m = jnp.dot(adj_b, h1_m, preferred_element_type=f32)
    logits_m = (jnp.dot(agg2_m.astype(jnp.bfloat16), prepped["wl2"],
                        preferred_element_type=f32)
                + jnp.dot(h1_m, prepped["wr2"], preferred_element_type=f32)
                + prepped["b2"])
    ref_matched = jax.nn.log_softmax(logits_m, axis=1)[:N, :N_CLASSES]
    err_matched = float(jnp.max(jnp.abs(out - ref_matched)))
    assert err_matched < 2e-2, f"kernel vs precision-matched reference: {err_matched}"

    # 3) full-f32 reference (original module semantics).  bf16 storage of
    #    features / weights / h1 bounds the error to a small fraction of the
    #    logit dynamic range; check 2) above is the tight structural check.
    agg_f = adj @ x
    h1_f = jnp.maximum(agg_f @ params["wl1"] + x @ params["wr1"] + params["b1"], 0.0)
    logits_f = (adj @ h1_f) @ params["wl2"] + h1_f @ params["wr2"] + params["b2"]
    ref_f32 = jax.nn.log_softmax(logits_f, axis=1)
    err_f32 = float(jnp.max(jnp.abs(out - ref_f32)))
    scale = float(jnp.max(jnp.abs(logits_f)))
    assert err_f32 < 0.1 * (1.0 + scale), (err_f32, scale)

    print("KERNEL_OK")
</pallas_src>

<mosaic_0001>
module attributes {stable_mosaic.version = 11 : i64} {
  func.func @_sage_conv1_kernel(%arg0: i32, %arg1: memref<128x256xi8, #tpu.memory_space<vmem>>, %arg2: memref<256x64xbf16, #tpu.memory_space<vmem>>, %arg3: memref<128x32xbf16, #tpu.memory_space<vmem>>, %arg4: memref<32x64xbf16, #tpu.memory_space<vmem>>, %arg5: memref<1x64xf32, #tpu.memory_space<vmem>>, %arg6: memref<128x64xbf16, #tpu.memory_space<vmem>>) attributes {dimension_semantics = [#tpu.dimension_semantics<parallel>], iteration_bounds = array<i64: 2>, scalar_prefetch = 0 : i64, scratch_operands = 0 : i64, tpu.core_type = #tpu.core_type<tc>, window_params = [{transform_indices = @transform_0, window_bounds = array<i64: 128, 256>}, {pipeline_mode = #tpu.pipeline_mode<synchronous>, transform_indices = @transform_1, window_bounds = array<i64: 256, 64>}, {transform_indices = @transform_2, window_bounds = array<i64: 128, 32>}, {pipeline_mode = #tpu.pipeline_mode<synchronous>, transform_indices = @transform_3, window_bounds = array<i64: 32, 64>}, {pipeline_mode = #tpu.pipeline_mode<synchronous>, transform_indices = @transform_4, window_bounds = array<i64: 1, 64>}, {transform_indices = @transform_5, window_bounds = array<i64: 128, 64>}]} {
    %c0 = arith.constant 0 : index
    %c0_0 = arith.constant 0 : index
    %0 = vector.load %arg1[%c0, %c0_0] : memref<128x256xi8, #tpu.memory_space<vmem>>, vector<128x256xi8>
    %1 = arith.sitofp %0 : vector<128x256xi8> to vector<128x256xbf16>
    %c0_1 = arith.constant 0 : index
    %c0_2 = arith.constant 0 : index
    %2 = vector.load %arg2[%c0_1, %c0_2] : memref<256x64xbf16, #tpu.memory_space<vmem>>, vector<256x64xbf16>
    %cst = arith.constant dense<0.000000e+00> : vector<128x64xf32>
    %3 = tpu.matmul %1, %2, %cst {dimension_numbers = #tpu.dot_dimension_numbers<[1], [0], [0], [1], [0, 0, 1, 1], [], []>} : vector<128x256xbf16>, vector<256x64xbf16>, vector<128x64xf32> -> vector<128x64xf32>
    %c0_3 = arith.constant 0 : index
    %c0_4 = arith.constant 0 : index
    %4 = vector.load %arg3[%c0_3, %c0_4] : memref<128x32xbf16, #tpu.memory_space<vmem>>, vector<128x32xbf16>
    %c0_5 = arith.constant 0 : index
    %c0_6 = arith.constant 0 : index
    %5 = vector.load %arg4[%c0_5, %c0_6] : memref<32x64xbf16, #tpu.memory_space<vmem>>, vector<32x64xbf16>
    %cst_7 = arith.constant dense<0.000000e+00> : vector<128x64xf32>
    %6 = tpu.matmul %4, %5, %cst_7 {dimension_numbers = #tpu.dot_dimension_numbers<[1], [0], [0], [1], [0, 0, 1, 1], [], []>} : vector<128x32xbf16>, vector<32x64xbf16>, vector<128x64xf32> -> vector<128x64xf32>
    %7 = arith.addf %3, %6 : vector<128x64xf32>
    %c0_8 = arith.constant 0 : index
    %c0_9 = arith.constant 0 : index
    %8 = vector.load %arg5[%c0_8, %c0_9] : memref<1x64xf32, #tpu.memory_space<vmem>>, vector<1x64xf32>
    %9 = vector.broadcast %8 : vector<1x64xf32> to vector<128x64xf32>
    %10 = arith.addf %7, %9 : vector<128x64xf32>
    %cst_10 = arith.constant 0.000000e+00 : f32
    %11 = vector.broadcast %cst_10 : f32 to vector<128x64xf32>
    %12 = arith.maximumf %10, %11 : vector<128x64xf32>
    %13 = arith.truncf %12 : vector<128x64xf32> to vector<128x64xbf16>
    %c0_11 = arith.constant 0 : index
    %c0_12 = arith.constant 0 : index
    %14 = vector.load %arg6[%c0_11, %c0_12] : memref<128x64xbf16, #tpu.memory_space<vmem>>, vector<128x64xbf16>
    tpu.vector_store %arg6[%c0_11, %c0_12], %13 {strides = array<i32>} : memref<128x64xbf16, #tpu.memory_space<vmem>>, vector<128x64xbf16>,
    return
  }
  func.func @transform_0(%arg0: i32) -> (i32, i32) {
    %c0_i32 = arith.constant 0 : i32
    %c0_i32_0 = arith.constant 0 : i32
    return %arg0, %c0_i32 : i32, i32
  }
  func.func @transform_1(%arg0: i32) -> (i32, i32) {
    %c0_i32 = arith.constant 0 : i32
    %c0_i32_0 = arith.constant 0 : i32
    %c0_i32_1 = arith.constant 0 : i32
    return %c0_i32, %c0_i32_0 : i32, i32
  }
  func.func @transform_2(%arg0: i32) -> (i32, i32) {
    %c0_i32 = arith.constant 0 : i32
    %c0_i32_0 = arith.constant 0 : i32
    return %arg0, %c0_i32 : i32, i32
  }
  func.func @transform_3(%arg0: i32) -> (i32, i32) {
    %c0_i32 = arith.constant 0 : i32
    %c0_i32_0 = arith.constant 0 : i32
    %c0_i32_1 = arith.constant 0 : i32
    return %c0_i32, %c0_i32_0 : i32, i32
  }
  func.func @transform_4(%arg0: i32) -> (i32, i32) {
    %c0_i32 = arith.constant 0 : i32
    %c0_i32_0 = arith.constant 0 : i32
    %c0_i32_1 = arith.constant 0 : i32
    return %c0_i32, %c0_i32_0 : i32, i32
  }
  func.func @transform_5(%arg0: i32) -> (i32, i32) {
    %c0_i32 = arith.constant 0 : i32
    %c0_i32_0 = arith.constant 0 : i32
    return %arg0, %c0_i32 : i32, i32
  }
}

</mosaic_0001>

<llo_original>
// kernel: tpu_custom_call.1
$region0: #{tpu_custom_call.1}
  #allocation0 [shape = 'u32[]', space=smem, size = 0x4, offset = 0x4, fixed_abs, tag = 'smem constant byte address 0x4 - core index']
  #allocation1 [shape = 'u32[72,128]{1,0:T(1,128)}', space=vmem, size = 0x9000, scoped, tag = 'internal scratch']
  %s0 = inlined_call_operand.vmem [shape: s8[256,256], index: 0, kind: input, shape index: {}]
  %s1 = inlined_call_operand.vmem [shape: bf16[256,64], index: 1, kind: input, shape index: {}]
  %s2 = inlined_call_operand.vmem [shape: bf16[256,32], index: 2, kind: input, shape index: {}]
  %s3 = inlined_call_operand.vmem [shape: bf16[32,64], index: 3, kind: input, shape index: {}]
  %s4 = inlined_call_operand.vmem [shape: f32[1,64], index: 4, kind: input, shape index: {}]
  %s5 = inlined_call_operand.vmem [shape: bf16[256,64], index: 5, kind: output, shape index: {}]
  %s6 = sld [smem:[#allocation0]]
  $region53: #{tpu_custom_call.1} parent=0
    _
  %s8 = ssub.s32 1, %s6
  %s9 = scalar_select 0, %s8, %s6
  loop: start=0, step=1, limit=4
  $region2: #{tpu_custom_call.1} parent=0 // loop_pre_header
    _
  $region3: #{tpu_custom_call.1} parent=0 // loop_header
    %s11 = sphi 0, %s15
    %p12 = scmp.ge.s32.totalorder %s11, 4
    %s21 = sphi 0, %s23
    %s24 = sphi 0, %s21
    %s25 = sphi 0, %s24
    %s41 = sphi 0, %s25
    %s45 = sphi 0, %s45
    %s47 = sphi 0, %s45
    %s48 = sphi 0, %s47
    %s62 = sphi 0, %s48
    %s68 = sphi 0, %s70
    %s71 = sphi 0, %s68
    %s72 = sphi 0, %s71
    %s88 = sphi 0, %s72
    %s92 = sphi 0, %s92
    %s94 = sphi 0, %s92
    %s95 = sphi 0, %s94
    %s109 = sphi 0, %s95
    %s113 = sphi 0, %s113
    %s115 = sphi 0, %s113
    %s116 = sphi 0, %s115
    %s130 = sphi 0, %s116
    %s136 = sphi 0, %s138
    %s139 = sphi 0, %s136
    %s140 = sphi 0, %s139
    %s156 = sphi 0, %s140
  $region4: #{tpu_custom_call.1} parent=0 // loop_header_branch
    %14 = sbr.rel (%p12) target = $region8
  $region5: #{tpu_custom_call.1} parent=0 // loop_body
    %s16 = ssub.s32 %s11, 1
    %s17 = ssub.s32 %s11, 2
    %s18 = sadd.s32 %s11, 1
    %s19 = ssub.s32 %s11, %s18
    %p20 = scmp.eq.s32.totalorder %s19, 0
    %s22 = sadd.s32 %s21, 1
    %s23 = scalar_select %p20, %s21, %s22
    %p26 = pneg %p20
    %p27 = scmp.eq.s32.totalorder %s11, 1
    %p28 = por %p26, %p27
    %p29 = scmp.ne.s32.totalorder %s21, %s24
    %p30 = scmp.eq.s32.totalorder %s11, 0
    %p31 = por %p29, %p30
    %p32 = scmp.ne.s32.totalorder %s21, %s24
    %p33 = scmp.eq.s32.totalorder %s16, 1
    %p34 = por %p32, %p33
    %p35 = scmp.ne.s32.totalorder %s24, %s25
    %p36 = scmp.eq.s32.totalorder %s16, 0
    %p37 = por %p35, %p36
    %p38 = scmp.ne.s32.totalorder %s24, %s25
    %p39 = scmp.eq.s32.totalorder %s17, 1
    %p40 = por %p38, %p39
    %p42 = scmp.ne.s32.totalorder %s25, %s41
    %p43 = scmp.eq.s32.totalorder %s17, 0
    %p44 = por %p42, %p43
    %s46 = sadd.s32 %s45, 1
    %p49 = scmp.eq.s32.totalorder %s11, 1
    %p50 = scmp.ne.s32.totalorder %s45, %s47
    %p51 = scmp.eq.s32.totalorder %s11, 0
    %p52 = por %p50, %p51
    %p53 = scmp.ne.s32.totalorder %s45, %s47
    %p54 = scmp.eq.s32.totalorder %s16, 1
    %p55 = por %p53, %p54
    %p56 = scmp.ne.s32.totalorder %s47, %s48
    %p57 = scmp.eq.s32.totalorder %s16, 0
    %p58 = por %p56, %p57
    %p59 = scmp.ne.s32.totalorder %s47, %s48
    %p60 = scmp.eq.s32.totalorder %s17, 1
    %p61 = por %p59, %p60
    %p63 = scmp.ne.s32.totalorder %s48, %s62
    %p64 = scmp.eq.s32.totalorder %s17, 0
    %p65 = por %p63, %p64
    %s66 = ssub.s32 %s11, %s18
    %p67 = scmp.eq.s32.totalorder %s66, 0
    %s69 = sadd.s32 %s68, 1
    %s70 = scalar_select %p67, %s68, %s69
    %p73 = pneg %p67
    %p74 = scmp.eq.s32.totalorder %s11, 1
    %p75 = por %p73, %p74
    %p76 = scmp.ne.s32.totalorder %s68, %s71
    %p77 = scmp.eq.s32.totalorder %s11, 0
    %p78 = por %p76, %p77
    %p79 = scmp.ne.s32.totalorder %s68, %s71
    %p80 = scmp.eq.s32.totalorder %s16, 1
    %p81 = por %p79, %p80
    %p82 = scmp.ne.s32.totalorder %s71, %s72
    %p83 = scmp.eq.s32.totalorder %s16, 0
    %p84 = por %p82, %p83
    %p85 = scmp.ne.s32.totalorder %s71, %s72
    %p86 = scmp.eq.s32.totalorder %s17, 1
    %p87 = por %p85, %p86
    %p89 = scmp.ne.s32.totalorder %s72, %s88
    %p90 = scmp.eq.s32.totalorder %s17, 0
    %p91 = por %p89, %p90
    %s93 = sadd.s32 %s92, 1
    %p96 = scmp.eq.s32.totalorder %s11, 1
    %p97 = scmp.ne.s32.totalorder %s92, %s94
    %p98 = scmp.eq.s32.totalorder %s11, 0
    %p99 = por %p97, %p98
    %p100 = scmp.ne.s32.totalorder %s92, %s94
    %p101 = scmp.eq.s32.totalorder %s16, 1
    %p102 = por %p100, %p101
    %p103 = scmp.ne.s32.totalorder %s94, %s95
    %p104 = scmp.eq.s32.totalorder %s16, 0
    %p105 = por %p103, %p104
    %p106 = scmp.ne.s32.totalorder %s94, %s95
    %p107 = scmp.eq.s32.totalorder %s17, 1
    %p108 = por %p106, %p107
    %p110 = scmp.ne.s32.totalorder %s95, %s109
    %p111 = scmp.eq.s32.totalorder %s17, 0
    %p112 = por %p110, %p111
    %s114 = sadd.s32 %s113, 1
    %p117 = scmp.eq.s32.totalorder %s11, 1
    %p118 = scmp.ne.s32.totalorder %s113, %s115
    %p119 = scmp.eq.s32.totalorder %s11, 0
    %p120 = por %p118, %p119
    %p121 = scmp.ne.s32.totalorder %s113, %s115
    %p122 = scmp.eq.s32.totalorder %s16, 1
    %p123 = por %p121, %p122
    %p124 = scmp.ne.s32.totalorder %s115, %s116
    %p125 = scmp.eq.s32.totalorder %s16, 0
    %p126 = por %p124, %p125
    %p127 = scmp.ne.s32.totalorder %s115, %s116
    %p128 = scmp.eq.s32.totalorder %s17, 1
    %p129 = por %p127, %p128
    %p131 = scmp.ne.s32.totalorder %s116, %s130
    %p132 = scmp.eq.s32.totalorder %s17, 0
    %p133 = por %p131, %p132
    %s134 = ssub.s32 %s11, %s18
    %p135 = scmp.eq.s32.totalorder %s134, 0
    %s137 = sadd.s32 %s136, 1
    %s138 = scalar_select %p135, %s136, %s137
    %p141 = pneg %p135
    %p142 = scmp.eq.s32.totalorder %s11, 1
    %p143 = por %p141, %p142
    %p144 = scmp.ne.s32.totalorder %s136, %s139
    %p145 = scmp.eq.s32.totalorder %s11, 0
    %p146 = por %p144, %p145
    %p147 = scmp.ne.s32.totalorder %s136, %s139
    %p148 = scmp.eq.s32.totalorder %s16, 1
    %p149 = por %p147, %p148
    %p150 = scmp.ne.s32.totalorder %s139, %s140
    %p151 = scmp.eq.s32.totalorder %s16, 0
    %p152 = por %p150, %p151
    %p153 = scmp.ne.s32.totalorder %s139, %s140
    %p154 = scmp.eq.s32.totalorder %s17, 1
    %p155 = por %p153, %p154
    %p157 = scmp.ne.s32.totalorder %s140, %s156
    %p158 = scmp.eq.s32.totalorder %s17, 0
    %p159 = por %p157, %p158
    %p160 = scmp.le.s32.totalorder 1, %s11
    %p161 = scmp.lt.s32.totalorder %s11, 3
    %p162 = pnand %p160, %p161
    %p163 = pneg %p162
    // Predicated region
    $region9: #{tpu_custom_call.1} parent=5 // pred_check
      _
    $region10: #{tpu_custom_call.1} parent=5 // pred_check_branch
      %165 = sbr.rel (%p162) target = $region12
    $region11: #{tpu_custom_call.1} parent=5 // pred_region
      %s166 = ssub.s32 %s11, 1
      // Predicated region
      $region13: #{tpu_custom_call.1} parent=11 // pred_check
        %p167 = pneg %p58
      $region14: #{tpu_custom_call.1} parent=11 // pred_check_branch
        %169 = sbr.rel (%p167) target = $region16
      $region15: #{tpu_custom_call.1} parent=11 // pred_region
        _
      $region16: #{tpu_custom_call.1} parent=11 // pred_fallthru
        _
      // Predicated region
      $region17: #{tpu_custom_call.1} parent=11 // pred_check
        %p170 = pneg %p105
      $region18: #{tpu_custom_call.1} parent=11 // pred_check_branch
        %172 = sbr.rel (%p170) target = $region20
      $region19: #{tpu_custom_call.1} parent=11 // pred_region
        _
      $region20: #{tpu_custom_call.1} parent=11 // pred_fallthru
        _
      // Predicated region
      $region21: #{tpu_custom_call.1} parent=11 // pred_check
        %p173 = pneg %p126
      $region22: #{tpu_custom_call.1} parent=11 // pred_check_branch
        %175 = sbr.rel (%p173) target = $region24
      $region23: #{tpu_custom_call.1} parent=11 // pred_region
        _
      $region24: #{tpu_custom_call.1} parent=11 // pred_fallthru
        _
    $region12: #{tpu_custom_call.1} parent=5 // pred_fallthru
      _
    %p176 = scmp.lt.s32.totalorder %s11, 2
    // Predicated region
    $region25: #{tpu_custom_call.1} parent=5 // pred_check
      %p177 = pneg %p176
    $region26: #{tpu_custom_call.1} parent=5 // pred_check_branch
      %179 = sbr.rel (%p177) target = $region28
    $region27: #{tpu_custom_call.1} parent=5 // pred_region
      // Predicated region
      $region29: #{tpu_custom_call.1} parent=27 // pred_check
        %p180 = pneg %p31
      $region30: #{tpu_custom_call.1} parent=27 // pred_check_branch
        %182 = sbr.rel (%p180) target = $region32
      $region31: #{tpu_custom_call.1} parent=27 // pred_region
        %s183 = smul.u32 4, %s11
        %p184 = scmp.lt.s32.totalorder %s183, 7
        %s185 = scalar_select %p184, %s183, 7
        %s186 = smul.addr %s185, 2
        %s187 = smul.addr %s186, 8
        %s188 = scalar_lea.vmem %s0, %s187
        %s189 = smul.u32 4, %s11
      $region32: #{tpu_custom_call.1} parent=27 // pred_fallthru
        _
      // Predicated region
      $region33: #{tpu_custom_call.1} parent=27 // pred_check
        %p190 = pneg %p78
      $region34: #{tpu_custom_call.1} parent=27 // pred_check_branch
        %192 = sbr.rel (%p190) target = $region36
      $region35: #{tpu_custom_call.1} parent=27 // pred_region
        %s193 = smul.u32 16, %s11
        %p194 = scmp.lt.s32.totalorder %s193, 31
        %s195 = scalar_select %p194, %s193, 31
        %s196 = smul.addr %s195, 4
        %s197 = scalar_lea.vmem %s2, %s196
        %s198 = smul.u32 16, %s11
      $region36: #{tpu_custom_call.1} parent=27 // pred_fallthru
        _
    $region28: #{tpu_custom_call.1} parent=5 // pred_fallthru
      _
    %p199 = scmp.le.s32.totalorder 1, %s11
    %p200 = scmp.lt.s32.totalorder %s11, 3
    %p201 = pnand %p199, %p200
    %p202 = pneg %p201
    // Predicated region
    $region37: #{tpu_custom_call.1} parent=5 // pred_check
      _
    $region38: #{tpu_custom_call.1} parent=5 // pred_check_branch
      %204 = sbr.rel (%p201) target = $region40
    $region39: #{tpu_custom_call.1} parent=5 // pred_region
      %s205 = ssub.s32 %s11, 1
      %s206 = smul.u32 4, %s16
      %p207 = scmp.lt.s32.totalorder %s206, 7
      %s208 = scalar_select %p207, %s206, 7
      %s209 = smul.addr %s208, 2
      %s210 = smul.addr %s209, 8
      %s211 = scalar_lea.vmem %s0, %s210
      %p212 = pneg %p37
      %p213 = pneg %p34
      %p214 = pneg %p58
      %p215 = pneg %p55
      %s216 = smul.u32 16, %s16
      %p217 = scmp.lt.s32.totalorder %s216, 31
      %s218 = scalar_select %p217, %s216, 31
      %s219 = smul.addr %s218, 4
      %s220 = scalar_lea.vmem %s2, %s219
      %p221 = pneg %p84
      %p222 = pneg %p81
      %p223 = pneg %p105
      %p224 = pneg %p102
      %p225 = pneg %p126
      %p226 = pneg %p123
      %p227 = pneg %p152
      %p228 = pneg %p149
      %s229 = smul.u32 16, %s16
      %p230 = scmp.lt.s32.totalorder %s229, 31
      %s231 = scalar_select %p230, %s229, 31
      %s232 = smul.addr %s231, 4
      %s233 = scalar_lea.vmem %s5, %s232
      %s234 = smul.u32 4, %s16
      %p235 = scmp.lt.s32.totalorder %s234, 7
      %s236 = scalar_select %p235, %s234, 7
      %s237 = smul.addr %s236, 2
      %s238 = smul.addr %s237, 8
      %s239 = scalar_lea.vmem %s0, %s238
      %s240 = smul.u32 4, %s16
      %s241 = smul.u32 16, %s16
      %p242 = scmp.lt.s32.totalorder %s241, 31
      %s243 = scalar_select %p242, %s241, 31
      %s244 = smul.addr %s243, 4
      %s245 = scalar_lea.vmem %s2, %s244
      %s246 = smul.u32 16, %s16
      %s247 = smul.u32 16, %s16
      %p248 = scmp.lt.s32.totalorder %s247, 31
      %s249 = scalar_select %p248, %s247, 31
      %s250 = smul.addr %s249, 4
      %s251 = scalar_lea.vmem %s5, %s250
      %s252 = smul.u32 16, %s16
      %v254 = vld [vmem:[%s239] sm:$0xff]
      %v255 = vld [vmem:[%s239 + $0x8] sm:$0xff]
      %v256 = vld [vmem:[%s239 + $0x10] sm:$0xff]
      %v257 = vld [vmem:[%s239 + $0x18] sm:$0xff]
      %v258 = vld [vmem:[%s239 + $0x20] sm:$0xff]
      %v259 = vld [vmem:[%s239 + $0x28] sm:$0xff]
      %v260 = vld [vmem:[%s239 + $0x30] sm:$0xff]
      %v261 = vld [vmem:[%s239 + $0x38] sm:$0xff]
      %v262 = vunpack.c.0.s8 %v254
      %v263 = vunpack.c.0.s8 %v255
      %v264 = vunpack.c.1.s8 %v254
      %v265 = vunpack.c.1.s8 %v255
      %v266 = vunpack.c.2.s8 %v254
      %v267 = vunpack.c.2.s8 %v255
      %v268 = vunpack.c.3.s8 %v254
      %v269 = vunpack.c.3.s8 %v255
      %v270 = vunpack.c.0.s8 %v256
      %v271 = vunpack.c.0.s8 %v257
      %v272 = vunpack.c.1.s8 %v256
      %v273 = vunpack.c.1.s8 %v257
      %v274 = vunpack.c.2.s8 %v256
      %v275 = vunpack.c.2.s8 %v257
      %v276 = vunpack.c.3.s8 %v256
      %v277 = vunpack.c.3.s8 %v257
      %v278 = vunpack.c.0.s8 %v258
      %v279 = vunpack.c.0.s8 %v259
      %v280 = vunpack.c.1.s8 %v258
      %v281 = vunpack.c.1.s8 %v259
      %v282 = vunpack.c.2.s8 %v258
      %v283 = vunpack.c.2.s8 %v259
      %v284 = vunpack.c.3.s8 %v258
      %v285 = vunpack.c.3.s8 %v259
      %v286 = vunpack.c.0.s8 %v260
      %v287 = vunpack.c.0.s8 %v261
      %v288 = vunpack.c.1.s8 %v260
      %v289 = vunpack.c.1.s8 %v261
      %v290 = vunpack.c.2.s8 %v260
      %v291 = vunpack.c.2.s8 %v261
      %v292 = vunpack.c.3.s8 %v260
      %v293 = vunpack.c.3.s8 %v261
      %v294 = vcvt.s32.f32 %v262
      %v295 = vcvt.s32.f32 %v263
      %v296 = vcvt.s32.f32 %v264
      %v297 = vcvt.s32.f32 %v265
      %v298 = vcvt.s32.f32 %v266
      %v299 = vcvt.s32.f32 %v267
      %v300 = vcvt.s32.f32 %v268
      %v301 = vcvt.s32.f32 %v269
      %v302 = vcvt.s32.f32 %v270
      %v303 = vcvt.s32.f32 %v271
      %v304 = vcvt.s32.f32 %v272
      %v305 = vcvt.s32.f32 %v273
      %v306 = vcvt.s32.f32 %v274
      %v307 = vcvt.s32.f32 %v275
      %v308 = vcvt.s32.f32 %v276
      %v309 = vcvt.s32.f32 %v277
      %v310 = vcvt.s32.f32 %v278
      %v311 = vcvt.s32.f32 %v279
      %v312 = vcvt.s32.f32 %v280
      %v313 = vcvt.s32.f32 %v281
      %v314 = vcvt.s32.f32 %v282
      %v315 = vcvt.s32.f32 %v283
      %v316 = vcvt.s32.f32 %v284
      %v317 = vcvt.s32.f32 %v285
      %v318 = vcvt.s32.f32 %v286
      %v319 = vcvt.s32.f32 %v287
      %v320 = vcvt.s32.f32 %v288
      %v321 = vcvt.s32.f32 %v289
      %v322 = vcvt.s32.f32 %v290
      %v323 = vcvt.s32.f32 %v291
      %v324 = vcvt.s32.f32 %v292
      %v325 = vcvt.s32.f32 %v293
      %v326 = vpack.c.bf16 %v296, %v294
      %v327 = vpack.c.bf16 %v297, %v295
      %v328 = vpack.c.bf16 %v300, %v298
      %v329 = vpack.c.bf16 %v301, %v299
      %v330 = vpack.c.bf16 %v304, %v302
      %v331 = vpack.c.bf16 %v305, %v303
      %v332 = vpack.c.bf16 %v308, %v306
      %v333 = vpack.c.bf16 %v309, %v307
      %v334 = vpack.c.bf16 %v312, %v310
      %v335 = vpack.c.bf16 %v313, %v311
      %v336 = vpack.c.bf16 %v316, %v314
      %v337 = vpack.c.bf16 %v317, %v315
      %v338 = vpack.c.bf16 %v320, %v318
      %v339 = vpack.c.bf16 %v321, %v319
      %v340 = vpack.c.bf16 %v324, %v322
      %v341 = vpack.c.bf16 %v325, %v323
      %v342 = vld [vmem:[%s1] sm:$0xf]
      %v343 = vld [vmem:[%s1 + $0x4] sm:$0xf]
      %v344 = vld [vmem:[%s1 + $0x8] sm:$0xf]
      %v345 = vld [vmem:[%s1 + $0xc] sm:$0xf]
      %v346 = vld [vmem:[%s1 + $0x10] sm:$0xf]
      %v347 = vld [vmem:[%s1 + $0x14] sm:$0xf]
      %v348 = vld [vmem:[%s1 + $0x18] sm:$0xf]
      %v349 = vld [vmem:[%s1 + $0x1c] sm:$0xf]
      %v350 = vld [vmem:[%s1 + $0x20] sm:$0xf]
      %v351 = vld [vmem:[%s1 + $0x24] sm:$0xf]
      %v352 = vld [vmem:[%s1 + $0x28] sm:$0xf]
      %v353 = vld [vmem:[%s1 + $0x2c] sm:$0xf]
      %v354 = vld [vmem:[%s1 + $0x30] sm:$0xf]
      %v355 = vld [vmem:[%s1 + $0x34] sm:$0xf]
      %v356 = vld [vmem:[%s1 + $0x38] sm:$0xf]
      %v357 = vld [vmem:[%s1 + $0x3c] sm:$0xf]
      %v358 = vld [vmem:[%s1 + $0x40] sm:$0xf]
      %v359 = vld [vmem:[%s1 + $0x44] sm:$0xf]
      %v360 = vld [vmem:[%s1 + $0x48] sm:$0xf]
      %v361 = vld [vmem:[%s1 + $0x4c] sm:$0xf]
      %v362 = vld [vmem:[%s1 + $0x50] sm:$0xf]
      %v363 = vld [vmem:[%s1 + $0x54] sm:$0xf]
      %v364 = vld [vmem:[%s1 + $0x58] sm:$0xf]
      %v365 = vld [vmem:[%s1 + $0x5c] sm:$0xf]
      %v366 = vld [vmem:[%s1 + $0x60] sm:$0xf]
      %v367 = vld [vmem:[%s1 + $0x64] sm:$0xf]
      %v368 = vld [vmem:[%s1 + $0x68] sm:$0xf]
      %v369 = vld [vmem:[%s1 + $0x6c] sm:$0xf]
      %v370 = vld [vmem:[%s1 + $0x70] sm:$0xf]
      %v371 = vld [vmem:[%s1 + $0x74] sm:$0xf]
      %v372 = vld [vmem:[%s1 + $0x78] sm:$0xf]
      %v373 = vld [vmem:[%s1 + $0x7c] sm:$0xf]
      %v374 = vld [vmem:[%s245] sm:$0xf]
      %v375 = vld [vmem:[%s245 + $0x4] sm:$0xf]
      %v376 = vld [vmem:[%s245 + $0x8] sm:$0xf]
      %v377 = vld [vmem:[%s245 + $0xc] sm:$0xf]
      %v378 = vld [vmem:[%s245 + $0x10] sm:$0xf]
      %v379 = vld [vmem:[%s245 + $0x14] sm:$0xf]
      %v380 = vld [vmem:[%s245 + $0x18] sm:$0xf]
      %v381 = vld [vmem:[%s245 + $0x1c] sm:$0xf]
      %v382 = vld [vmem:[%s245 + $0x20] sm:$0xf]
      %v383 = vld [vmem:[%s245 + $0x24] sm:$0xf]
      %v384 = vld [vmem:[%s245 + $0x28] sm:$0xf]
      %v385 = vld [vmem:[%s245 + $0x2c] sm:$0xf]
      %v386 = vld [vmem:[%s245 + $0x30] sm:$0xf]
      %v387 = vld [vmem:[%s245 + $0x34] sm:$0xf]
      %v388 = vld [vmem:[%s245 + $0x38] sm:$0xf]
      %v389 = vld [vmem:[%s245 + $0x3c] sm:$0xf]
      %v390 = vld [vmem:[%s3] sm:$0xf]
      %v391 = vld [vmem:[%s3 + $0x4] sm:$0xf]
      %v392 = vld [vmem:[%s3 + $0x8] sm:$0xf]
      %v393 = vld [vmem:[%s3 + $0xc] sm:$0xf]
      %v410 = vunpack.c.l.b16 %v374
      %v411 = vunpack.c.l.b16 %v375
      %v412 = vunpack.c.l.b16 %v376
      %v413 = vunpack.c.l.b16 %v377
      %v414 = vunpack.c.l.b16 %v378
      %v415 = vunpack.c.l.b16 %v379
      %v416 = vunpack.c.l.b16 %v380
      %v417 = vunpack.c.l.b16 %v381
      %v418 = vunpack.c.l.b16 %v382
      %v419 = vunpack.c.l.b16 %v383
      %v420 = vunpack.c.l.b16 %v384
      %v421 = vunpack.c.l.b16 %v385
      %v422 = vunpack.c.l.b16 %v386
      %v423 = vunpack.c.l.b16 %v387
      %v424 = vunpack.c.l.b16 %v388
      %v425 = vunpack.c.l.b16 %v389
      %v426 = vpack.c.b16 %v411, %v410
      %v427 = vpack.c.b16 %v413, %v412
      %v428 = vpack.c.b16 %v415, %v414
      %v429 = vpack.c.b16 %v417, %v416
      %v430 = vpack.c.b16 %v419, %v418
      %v431 = vpack.c.b16 %v421, %v420
      %v432 = vpack.c.b16 %v423, %v422
      %v433 = vpack.c.b16 %v425, %v424
      %v438 = vunpack.c.l.b16 %v390
      %v439 = vunpack.c.l.b16 %v391
      %v440 = vunpack.c.l.b16 %v392
      %v441 = vunpack.c.l.b16 %v393
      %v442 = vpack.c.b16 %v439, %v438
      %v443 = vpack.c.b16 %v441, %v440
      %vm446 = vcmask 261120
      %v448 = vsel %vm446, %v426, 0
      %v451 = vsel %vm446, %v427, 0
      %v454 = vsel %vm446, %v428, 0
      %v457 = vsel %vm446, %v429, 0
      %v460 = vsel %vm446, %v430, 0
      %v463 = vsel %vm446, %v431, 0
      %v466 = vsel %vm446, %v432, 0
      %v469 = vsel %vm446, %v433, 0
      %471 = vmatpush.bf16.msra.mxu0 0
      %472 = vmatpush.bf16.msra.mxu0 0
      %473 = vmatpush.bf16.msra.mxu0 0
      %474 = vmatpush.bf16.msra.mxu0 0
      %475 = vmatpush.bf16.msra.mxu0 0
      %476 = vmatpush.bf16.msra.mxu0 0
      %477 = vmatpush.bf16.msra.mxu0 %v443
      %478 = vmatpush.bf16.msra.mxu0 %v442
      %479 = vmatmul.bf16.gmra.mxu0 %v448
      %v480 = vpop.f32.mrf.mxu0
      %v481 = vadd.f32 0.0, %v480
      %v482 = vpop.f32.mrf.mxu0
      %v483 = vadd.f32 0.0, %v482
      %484 = vmatmul.bf16.gmra.mxu0 %v451
      %v485 = vpop.f32.mrf.mxu0
      %v486 = vadd.f32 0.0, %v485
      %v487 = vpop.f32.mrf.mxu0
      %v488 = vadd.f32 0.0, %v487
      %489 = vmatmul.bf16.gmra.mxu0 %v454
      %v490 = vpop.f32.mrf.mxu0
      %v491 = vadd.f32 0.0, %v490
      %v492 = vpop.f32.mrf.mxu0
      %v493 = vadd.f32 0.0, %v492
      %494 = vmatmul.bf16.gmra.mxu0 %v457
      %v495 = vpop.f32.mrf.mxu0
      %v496 = vadd.f32 0.0, %v495
      %v497 = vpop.f32.mrf.mxu0
      %v498 = vadd.f32 0.0, %v497
      %499 = vmatmul.bf16.gmra.mxu0 %v460
      %v500 = vpop.f32.mrf.mxu0
      %v501 = vadd.f32 0.0, %v500
      %v502 = vpop.f32.mrf.mxu0
      %v503 = vadd.f32 0.0, %v502
      %504 = vmatmul.bf16.gmra.mxu0 %v463
      %v505 = vpop.f32.mrf.mxu0
      %v506 = vadd.f32 0.0, %v505
      %v507 = vpop.f32.mrf.mxu0
      %v508 = vadd.f32 0.0, %v507
      %509 = vmatmul.bf16.gmra.mxu0 %v466
      %v510 = vpop.f32.mrf.mxu0
      %v511 = vadd.f32 0.0, %v510
      %v512 = vpop.f32.mrf.mxu0
      %v513 = vadd.f32 0.0, %v512
      %514 = vmatmul.bf16.gmra.mxu0 %v469
      %v515 = vpop.f32.mrf.mxu0
      %v516 = vadd.f32 0.0, %v515
      %v517 = vpop.f32.mrf.mxu0
      %v518 = vadd.f32 0.0, %v517
      %519 = vdwg.mxu0
      %v552 = vunpack.c.l.b16 %v342
      %v553 = vunpack.c.l.b16 %v343
      %v554 = vunpack.c.l.b16 %v344
      %v555 = vunpack.c.l.b16 %v345
      %v556 = vunpack.c.l.b16 %v346
      %v557 = vunpack.c.l.b16 %v347
      %v558 = vunpack.c.l.b16 %v348
      %v559 = vunpack.c.l.b16 %v349
      %v560 = vunpack.c.l.b16 %v350
      %v561 = vunpack.c.l.b16 %v351
      %v562 = vunpack.c.l.b16 %v352
      %v563 = vunpack.c.l.b16 %v353
      %v564 = vunpack.c.l.b16 %v354
      %v565 = vunpack.c.l.b16 %v355
      %v566 = vunpack.c.l.b16 %v356
      %v567 = vunpack.c.l.b16 %v357
      %v568 = vunpack.c.l.b16 %v358
      %v569 = vunpack.c.l.b16 %v359
      %v570 = vunpack.c.l.b16 %v360
      %v571 = vunpack.c.l.b16 %v361
      %v572 = vunpack.c.l.b16 %v362
      %v573 = vunpack.c.l.b16 %v363
      %v574 = vunpack.c.l.b16 %v364
      %v575 = vunpack.c.l.b16 %v365
      %v576 = vunpack.c.l.b16 %v366
      %v577 = vunpack.c.l.b16 %v367
      %v578 = vunpack.c.l.b16 %v368
      %v579 = vunpack.c.l.b16 %v369
      %v580 = vunpack.c.l.b16 %v370
      %v581 = vunpack.c.l.b16 %v371
      %v582 = vunpack.c.l.b16 %v372
      %v583 = vunpack.c.l.b16 %v373
      %v584 = vpack.c.b16 %v553, %v552
      %v585 = vpack.c.b16 %v555, %v554
      %v586 = vpack.c.b16 %v557, %v556
      %v587 = vpack.c.b16 %v559, %v558
      %v588 = vpack.c.b16 %v561, %v560
      %v589 = vpack.c.b16 %v563, %v562
      %v590 = vpack.c.b16 %v565, %v564
      %v591 = vpack.c.b16 %v567, %v566
      %v592 = vpack.c.b16 %v569, %v568
      %v593 = vpack.c.b16 %v571, %v570
      %v594 = vpack.c.b16 %v573, %v572
      %v595 = vpack.c.b16 %v575, %v574
      %v596 = vpack.c.b16 %v577, %v576
      %v597 = vpack.c.b16 %v579, %v578
      %v598 = vpack.c.b16 %v581, %v580
      %v599 = vpack.c.b16 %v583, %v582
      %616 = vmatpush.bf16.msra.mxu0 %v591
      %617 = vmatpush.bf16.msra.mxu0 %v590
      %618 = vmatpush.bf16.msra.mxu0 %v589
      %619 = vmatpush.bf16.msra.mxu0 %v588
      %620 = vmatpush.bf16.msra.mxu0 %v587
      %621 = vmatpush.bf16.msra.mxu0 %v586
      %622 = vmatpush.bf16.msra.mxu0 %v585
      %623 = vmatpush.bf16.msra.mxu0 %v584
      %624 = vmatmul.bf16.gmra.mxu0 %v326
      %v625 = vpop.f32.mrf.mxu0
      %v626 = vadd.f32 %v481, %v625
      %v627 = vpop.f32.mrf.mxu0
      %v628 = vadd.f32 %v483, %v627
      %629 = vmatmul.bf16.gmra.mxu0 %v328
      %v630 = vpop.f32.mrf.mxu0
      %v631 = vadd.f32 %v486, %v630
      %v632 = vpop.f32.mrf.mxu0
      %v633 = vadd.f32 %v488, %v632
      %634 = vmatmul.bf16.gmra.mxu0 %v330
      %v635 = vpop.f32.mrf.mxu0
      %v636 = vadd.f32 %v491, %v635
      %v637 = vpop.f32.mrf.mxu0
      %v638 = vadd.f32 %v493, %v637
      %639 = vmatmul.bf16.gmra.mxu0 %v332
      %v640 = vpop.f32.mrf.mxu0
      %v641 = vadd.f32 %v496, %v640
      %v642 = vpop.f32.mrf.mxu0
      %v643 = vadd.f32 %v498, %v642
      %644 = vmatmul.bf16.gmra.mxu0 %v334
      %v645 = vpop.f32.mrf.mxu0
      %v646 = vadd.f32 %v501, %v645
      %v647 = vpop.f32.mrf.mxu0
      %v648 = vadd.f32 %v503, %v647
      %649 = vmatmul.bf16.gmra.mxu0 %v336
      %v650 = vpop.f32.mrf.mxu0
      %v651 = vadd.f32 %v506, %v650
      %v652 = vpop.f32.mrf.mxu0
      %v653 = vadd.f32 %v508, %v652
      %654 = vmatmul.bf16.gmra.mxu0 %v338
      %v655 = vpop.f32.mrf.mxu0
      %v656 = vadd.f32 %v511, %v655
      %v657 = vpop.f32.mrf.mxu0
      %v658 = vadd.f32 %v513, %v657
      %659 = vmatmul.bf16.gmra.mxu0 %v340
      %v660 = vpop.f32.mrf.mxu0
      %v661 = vadd.f32 %v516, %v660
      %v662 = vpop.f32.mrf.mxu0
      %v663 = vadd.f32 %v518, %v662
      %664 = vdwg.mxu0
      %665 = vmatpush.bf16.msra.mxu0 %v599
      %666 = vmatpush.bf16.msra.mxu0 %v598
      %667 = vmatpush.bf16.msra.mxu0 %v597
      %668 = vmatpush.bf16.msra.mxu0 %v596
      %669 = vmatpush.bf16.msra.mxu0 %v595
      %670 = vmatpush.bf16.msra.mxu0 %v594
      %671 = vmatpush.bf16.msra.mxu0 %v593
      %672 = vmatpush.bf16.msra.mxu0 %v592
      %673 = vmatmul.bf16.gmra.mxu0 %v327
      %v674 = vpop.f32.mrf.mxu0
      %v675 = vadd.f32 %v626, %v674
      %v676 = vpop.f32.mrf.mxu0
      %v677 = vadd.f32 %v628, %v676
      %678 = vmatmul.bf16.gmra.mxu0 %v329
      %v679 = vpop.f32.mrf.mxu0
      %v680 = vadd.f32 %v631, %v679
      %v681 = vpop.f32.mrf.mxu0
      %v682 = vadd.f32 %v633, %v681
      %683 = vmatmul.bf16.gmra.mxu0 %v331
      %v684 = vpop.f32.mrf.mxu0
      %v685 = vadd.f32 %v636, %v684
      %v686 = vpop.f32.mrf.mxu0
      %v687 = vadd.f32 %v638, %v686
      %688 = vmatmul.bf16.gmra.mxu0 %v333
      %v689 = vpop.f32.mrf.mxu0
      %v690 = vadd.f32 %v641, %v689
      %v691 = vpop.f32.mrf.mxu0
      %v692 = vadd.f32 %v643, %v691
      %693 = vmatmul.bf16.gmra.mxu0 %v335
      %v694 = vpop.f32.mrf.mxu0
      %v695 = vadd.f32 %v646, %v694
      %v696 = vpop.f32.mrf.mxu0
      %v697 = vadd.f32 %v648, %v696
      %698 = vmatmul.bf16.gmra.mxu0 %v337
      %v699 = vpop.f32.mrf.mxu0
      %v700 = vadd.f32 %v651, %v699
      %v701 = vpop.f32.mrf.mxu0
      %v702 = vadd.f32 %v653, %v701
      %703 = vmatmul.bf16.gmra.mxu0 %v339
      %v704 = vpop.f32.mrf.mxu0
      %v705 = vadd.f32 %v656, %v704
      %v706 = vpop.f32.mrf.mxu0
      %v707 = vadd.f32 %v658, %v706
      %708 = vmatmul.bf16.gmra.mxu0 %v341
      %v709 = vpop.f32.mrf.mxu0
      %v710 = vadd.f32 %v661, %v709
      %v711 = vpop.f32.mrf.mxu0
      %v712 = vadd.f32 %v663, %v711
      %713 = vdwg.mxu0
      %v714 = vld [vmem:[%s4] sm:$0x1]
      %v716 = vperm.slane %v714, 0
      %v718 = vadd.f32 %v675, %v716
      %v719 = vadd.f32 %v677, %v716
      %v720 = vadd.f32 %v680, %v716
      %v721 = vadd.f32 %v682, %v716
      %v722 = vadd.f32 %v685, %v716
      %v723 = vadd.f32 %v687, %v716
      %v724 = vadd.f32 %v690, %v716
      %v725 = vadd.f32 %v692, %v716
      %v726 = vadd.f32 %v695, %v716
      %v727 = vadd.f32 %v697, %v716
      %v728 = vadd.f32 %v700, %v716
      %v729 = vadd.f32 %v702, %v716
      %v730 = vadd.f32 %v705, %v716
      %v731 = vadd.f32 %v707, %v716
      %v732 = vadd.f32 %v710, %v716
      %v733 = vadd.f32 %v712, %v716
      %v734 = vmax.f32 %v718, 0.0
      %v735 = vmax.f32 %v719, 0.0
      %v736 = vmax.f32 %v720, 0.0
      %v737 = vmax.f32 %v721, 0.0
      %v738 = vmax.f32 %v722, 0.0
      %v739 = vmax.f32 %v723, 0.0
      %v740 = vmax.f32 %v724, 0.0
      %v741 = vmax.f32 %v725, 0.0
      %v742 = vmax.f32 %v726, 0.0
      %v743 = vmax.f32 %v727, 0.0
      %v744 = vmax.f32 %v728, 0.0
      %v745 = vmax.f32 %v729, 0.0
      %v746 = vmax.f32 %v730, 0.0
      %v747 = vmax.f32 %v731, 0.0
      %v748 = vmax.f32 %v732, 0.0
      %v749 = vmax.f32 %v733, 0.0
      %v750 = vpack.c.bf16 %v734, %v734
      %v751 = vpack.c.bf16 %v735, %v735
      %v752 = vpack.c.bf16 %v736, %v736
      %v753 = vpack.c.bf16 %v737, %v737
      %v754 = vpack.c.bf16 %v738, %v738
      %v755 = vpack.c.bf16 %v739, %v739
      %v756 = vpack.c.bf16 %v740, %v740
      %v757 = vpack.c.bf16 %v741, %v741
      %v758 = vpack.c.bf16 %v742, %v742
      %v759 = vpack.c.bf16 %v743, %v743
      %v760 = vpack.c.bf16 %v744, %v744
      %v761 = vpack.c.bf16 %v745, %v745
      %v762 = vpack.c.bf16 %v746, %v746
      %v763 = vpack.c.bf16 %v747, %v747
      %v764 = vpack.c.bf16 %v748, %v748
      %v765 = vpack.c.bf16 %v749, %v749
      %vm766 = vcmask 519168
      %767 = vst.msk [vmem:[%s251] sm:$0xf] %vm766, %v750
      %768 = vst.msk [vmem:[%s251 + $0x4] sm:$0xf] %vm766, %v751
      %769 = vst.msk [vmem:[%s251 + $0x8] sm:$0xf] %vm766, %v752
      %770 = vst.msk [vmem:[%s251 + $0xc] sm:$0xf] %vm766, %v753
      %771 = vst.msk [vmem:[%s251 + $0x10] sm:$0xf] %vm766, %v754
      %772 = vst.msk [vmem:[%s251 + $0x14] sm:$0xf] %vm766, %v755
      %773 = vst.msk [vmem:[%s251 + $0x18] sm:$0xf] %vm766, %v756
      %774 = vst.msk [vmem:[%s251 + $0x1c] sm:$0xf] %vm766, %v757
      %775 = vst.msk [vmem:[%s251 + $0x20] sm:$0xf] %vm766, %v758
      %776 = vst.msk [vmem:[%s251 + $0x24] sm:$0xf] %vm766, %v759
      %777 = vst.msk [vmem:[%s251 + $0x28] sm:$0xf] %vm766, %v760
      %778 = vst.msk [vmem:[%s251 + $0x2c] sm:$0xf] %vm766, %v761
      %779 = vst.msk [vmem:[%s251 + $0x30] sm:$0xf] %vm766, %v762
      %780 = vst.msk [vmem:[%s251 + $0x34] sm:$0xf] %vm766, %v763
      %781 = vst.msk [vmem:[%s251 + $0x38] sm:$0xf] %vm766, %v764
      %782 = vst.msk [vmem:[%s251 + $0x3c] sm:$0xf] %vm766, %v765
      %s783 = smul.u32 16, %s16
      %p784 = scmp.lt.s32.totalorder %s783, 31
      %s785 = scalar_select %p784, %s783, 31
      %s786 = smul.addr %s785, 4
      %s787 = scalar_lea.vmem %s5, %s786
      // Predicated region
      $region41: #{tpu_custom_call.1} parent=39 // pred_check
        %p788 = pneg %p149
      $region42: #{tpu_custom_call.1} parent=39 // pred_check_branch
        %790 = sbr.rel (%p788) target = $region44
      $region43: #{tpu_custom_call.1} parent=39 // pred_region
        %s791 = smul.u32 16, %s16
      $region44: #{tpu_custom_call.1} parent=39 // pred_fallthru
        _
    $region40: #{tpu_custom_call.1} parent=5 // pred_fallthru
      _
    %p792 = scmp.le.s32.totalorder 2, %s11
    // Predicated region
    $region45: #{tpu_custom_call.1} parent=5 // pred_check
      %p793 = pneg %p792
    $region46: #{tpu_custom_call.1} parent=5 // pred_check_branch
      %795 = sbr.rel (%p793) target = $region48
    $region47: #{tpu_custom_call.1} parent=5 // pred_region
      %s796 = ssub.s32 %s11, 2
      // Predicated region
      $region49: #{tpu_custom_call.1} parent=47 // pred_check
        %p797 = pneg %p155
      $region50: #{tpu_custom_call.1} parent=47 // pred_check_branch
        %799 = sbr.rel (%p797) target = $region52
      $region51: #{tpu_custom_call.1} parent=47 // pred_region
        %s800 = smul.u32 16, %s17
        %p801 = scmp.lt.s32.totalorder %s800, 31
        %s802 = scalar_select %p801, %s800, 31
        %s803 = smul.addr %s802, 4
        %s804 = scalar_lea.vmem %s5, %s803
      $region52: #{tpu_custom_call.1} parent=47 // pred_fallthru
        _
    $region48: #{tpu_custom_call.1} parent=5 // pred_fallthru
      _
  $region6: #{tpu_custom_call.1} parent=0 // loop_footer
    %s15 = sadd.s32 1, %s11
  $region7: #{tpu_custom_call.1} parent=0 // loop_footer_branch
    %10 = sbr.rel target = $region3
  $region8: #{tpu_custom_call.1} parent=0 // loop_exit
    _

</llo_original>
